<compile_context>
chip_gen: v5e
topology: v5e:2x2
jax: 0.10.0
libtpu: 0.0.40
codegen_flags: <defaults>
</compile_context>

<pallas_src>
import functools

import jax
import jax.numpy as jnp
from jax.experimental import pallas as pl
from jax.experimental.pallas import tpu as pltpu

HIDDEN = 128      # fc1 output width (matches nn.Linear(state_dim, 128))
LANE = 128        # vreg lane width


def _round_up(x, m):
    return ((x + m - 1) // m) * m


def _choose_tm(B, tm_max=1024, min_tiles=2):
    """Pick a 128-multiple batch tile: big enough to amortize per-step
    overhead, small enough to keep >= min_tiles grid steps (v7x megacore)."""
    b_pad = _round_up(max(B, 1), LANE)
    tm = min(tm_max, b_pad)
    if b_pad // tm < min_tiles and b_pad >= min_tiles * LANE:
        tm = _round_up(-(-b_pad // min_tiles), LANE)
    return tm


def critic_kernel(x_ref, w1_ref, b1_ref, w2_ref, b2_ref, out_ref):
    # x_ref: (tm, S)   w1_ref: (S, H)   b1_ref: (1, H)
    # w2_ref: (1, H) fc2 weight row     b2_ref: (1, 1)
    # out_ref: (1, 1, tm) -- lane-dense transposed value row for this tile.
    h = jnp.tanh(
        jnp.dot(x_ref[...], w1_ref[...], preferred_element_type=jnp.float32)
        + b1_ref[...])
    # fc2 as a single row-vector matmul: (1, H) @ (H, tm) -> (1, tm).
    # Keeps the store a full-lane unmasked vst (no 128-wide padded slab).
    v = jnp.dot(w2_ref[...], h.T, preferred_element_type=jnp.float32)
    out_ref[0] = v + b2_ref[...]


@functools.partial(jax.jit, static_argnames=("tm_max",))
def critic_forward(state, w1, b1, w2_row, b2, *, tm_max=1024):
    """state: (B, state_dim) f32; params as produced by init_critic_params.

    Returns value: (B, 1) f32.
    """
    B, S = state.shape
    H = w1.shape[1]

    tm = _choose_tm(B, tm_max=tm_max)
    B_pad = _round_up(B, tm)
    n_tiles = B_pad // tm

    x = state
    if B_pad != B:
        # Padded rows compute garbage values that are sliced off below.
        x = jnp.pad(state, ((0, B_pad - B), (0, 0)))

    out_rows = pl.pallas_call(
        critic_kernel,
        out_shape=jax.ShapeDtypeStruct((n_tiles, 1, tm), jnp.float32),
        grid=(n_tiles,),
        in_specs=[
            # batch tile marches over the grid; weights/biases stay resident
            pl.BlockSpec((tm, S), lambda i: (i, 0)),
            pl.BlockSpec((S, H), lambda i: (0, 0)),
            pl.BlockSpec((1, H), lambda i: (0, 0)),
            pl.BlockSpec((1, H), lambda i: (0, 0)),
            pl.BlockSpec((1, 1), lambda i: (0, 0)),
        ],
        out_specs=pl.BlockSpec((1, 1, tm), lambda i: (i, 0, 0)),
        compiler_params=pltpu.CompilerParams(
            dimension_semantics=("parallel",)),
    )(x, w1, b1, w2_row, b2)

    # (n_tiles, 1, tm) flattens back to per-example order; slice off padding.
    return out_rows.reshape(B_pad, 1)[:B]


def init_critic_params(key, state_dim, hidden=HIDDEN):
    """Deterministic init mirroring nn.Linear default (uniform +-1/sqrt(fan_in)).
    fc1 weight stored (in, out); fc2 weight stored as a (1, hidden) row."""
    k1, k2, k3, k4 = jax.random.split(key, 4)
    bound1 = 1.0 / jnp.sqrt(state_dim)
    bound2 = 1.0 / jnp.sqrt(hidden)
    w1 = jax.random.uniform(k1, (state_dim, hidden), jnp.float32, -bound1, bound1)
    b1 = jax.random.uniform(k2, (1, hidden), jnp.float32, -bound1, bound1)
    w2 = jax.random.uniform(k3, (1, hidden), jnp.float32, -bound2, bound2)
    b2 = jax.random.uniform(k4, (1, 1), jnp.float32, -bound2, bound2)
    return w1, b1, w2, b2


if __name__ == "__main__":
    key = jax.random.PRNGKey(0)
    k_params, k_state = jax.random.split(key)

    batch, state_dim = 256, 32          # -> 2 batch tiles of 128 rows
    w1, b1, w2_row, b2 = init_critic_params(k_params, state_dim)
    state = jax.random.normal(k_state, (batch, state_dim), jnp.float32)

    value = critic_forward(state, w1, b1, w2_row, b2)
    value = jax.block_until_ready(value)

    # Pure-JAX reference.
    ref = jnp.tanh(state @ w1 + b1) @ w2_row.T + b2
    assert value.shape == (batch, 1)
    assert jnp.allclose(value, ref, atol=1e-5, rtol=1e-5)

    print("KERNEL_OK")
</pallas_src>

<mosaic_0001>
module attributes {stable_mosaic.version = 11 : i64} {
  func.func @critic_kernel(%arg0: i32, %arg1: memref<128x32xf32, #tpu.memory_space<vmem>>, %arg2: memref<32x128xf32, #tpu.memory_space<vmem>>, %arg3: memref<1x128xf32, #tpu.memory_space<vmem>>, %arg4: memref<1x128xf32, #tpu.memory_space<vmem>>, %arg5: memref<1x1xf32, #tpu.memory_space<vmem>>, %arg6: memref<1x1x128xf32, #tpu.memory_space<vmem>>) attributes {dimension_semantics = [#tpu.dimension_semantics<parallel>], iteration_bounds = array<i64: 2>, scalar_prefetch = 0 : i64, scratch_operands = 0 : i64, tpu.core_type = #tpu.core_type<tc>, window_params = [{transform_indices = @transform_0, window_bounds = array<i64: 128, 32>}, {pipeline_mode = #tpu.pipeline_mode<synchronous>, transform_indices = @transform_1, window_bounds = array<i64: 32, 128>}, {pipeline_mode = #tpu.pipeline_mode<synchronous>, transform_indices = @transform_2, window_bounds = array<i64: 1, 128>}, {pipeline_mode = #tpu.pipeline_mode<synchronous>, transform_indices = @transform_3, window_bounds = array<i64: 1, 128>}, {pipeline_mode = #tpu.pipeline_mode<synchronous>, transform_indices = @transform_4, window_bounds = array<i64: 1, 1>}, {transform_indices = @transform_5, window_bounds = array<i64: 1, 1, 128>}]} {
    %c0 = arith.constant 0 : index
    %c0_0 = arith.constant 0 : index
    %0 = vector.load %arg1[%c0, %c0_0] : memref<128x32xf32, #tpu.memory_space<vmem>>, vector<128x32xf32>
    %c0_1 = arith.constant 0 : index
    %c0_2 = arith.constant 0 : index
    %1 = vector.load %arg2[%c0_1, %c0_2] : memref<32x128xf32, #tpu.memory_space<vmem>>, vector<32x128xf32>
    %cst = arith.constant dense<0.000000e+00> : vector<128x128xf32>
    %2 = tpu.matmul %0, %1, %cst {dimension_numbers = #tpu.dot_dimension_numbers<[1], [0], [0], [1], [0, 0, 1, 1], [], []>} : vector<128x32xf32>, vector<32x128xf32>, vector<128x128xf32> -> vector<128x128xf32>
    %c0_3 = arith.constant 0 : index
    %c0_4 = arith.constant 0 : index
    %3 = vector.load %arg3[%c0_3, %c0_4] : memref<1x128xf32, #tpu.memory_space<vmem>>, vector<1x128xf32>
    %4 = vector.broadcast %3 : vector<1x128xf32> to vector<128x128xf32>
    %5 = arith.addf %2, %4 : vector<128x128xf32>
    %6 = math.tanh %5 : vector<128x128xf32>
    %c0_5 = arith.constant 0 : index
    %c0_6 = arith.constant 0 : index
    %7 = vector.load %arg4[%c0_5, %c0_6] : memref<1x128xf32, #tpu.memory_space<vmem>>, vector<1x128xf32>
    %8 = tpu.transpose %6, [1, 0] : vector<128x128xf32> -> vector<128x128xf32>
    %cst_7 = arith.constant dense<0.000000e+00> : vector<1x128xf32>
    %9 = tpu.matmul %7, %8, %cst_7 {dimension_numbers = #tpu.dot_dimension_numbers<[1], [0], [0], [1], [0, 0, 1, 1], [], []>} : vector<1x128xf32>, vector<128x128xf32>, vector<1x128xf32> -> vector<1x128xf32>
    %c0_8 = arith.constant 0 : index
    %c0_9 = arith.constant 0 : index
    %10 = vector.load %arg5[%c0_8, %c0_9] : memref<1x1xf32, #tpu.memory_space<vmem>>, vector<1x1xf32>
    %11 = vector.broadcast %10 : vector<1x1xf32> to vector<1x128xf32>
    %12 = arith.addf %9, %11 : vector<1x128xf32>
    %c0_10 = arith.constant 0 : index
    %c0_11 = arith.constant 0 : index
    %c0_12 = arith.constant 0 : index
    %13 = vector.load %arg6[%c0_10, %c0_11, %c0_12] : memref<1x1x128xf32, #tpu.memory_space<vmem>>, vector<1x1x128xf32>
    %14 = vector.shape_cast %13 : vector<1x1x128xf32> to vector<1x128xf32>
    %15 = vector.shape_cast %12 : vector<1x128xf32> to vector<1x1x128xf32>
    tpu.vector_store %arg6[%c0_10, %c0_11, %c0_12], %15 {strides = array<i32>} : memref<1x1x128xf32, #tpu.memory_space<vmem>>, vector<1x1x128xf32>,
    return
  }
  func.func @transform_0(%arg0: i32) -> (i32, i32) {
    %c0_i32 = arith.constant 0 : i32
    %c0_i32_0 = arith.constant 0 : i32
    return %arg0, %c0_i32 : i32, i32
  }
  func.func @transform_1(%arg0: i32) -> (i32, i32) {
    %c0_i32 = arith.constant 0 : i32
    %c0_i32_0 = arith.constant 0 : i32
    %c0_i32_1 = arith.constant 0 : i32
    return %c0_i32, %c0_i32_0 : i32, i32
  }
  func.func @transform_2(%arg0: i32) -> (i32, i32) {
    %c0_i32 = arith.constant 0 : i32
    %c0_i32_0 = arith.constant 0 : i32
    %c0_i32_1 = arith.constant 0 : i32
    return %c0_i32, %c0_i32_0 : i32, i32
  }
  func.func @transform_3(%arg0: i32) -> (i32, i32) {
    %c0_i32 = arith.constant 0 : i32
    %c0_i32_0 = arith.constant 0 : i32
    %c0_i32_1 = arith.constant 0 : i32
    return %c0_i32, %c0_i32_0 : i32, i32
  }
  func.func @transform_4(%arg0: i32) -> (i32, i32) {
    %c0_i32 = arith.constant 0 : i32
    %c0_i32_0 = arith.constant 0 : i32
    %c0_i32_1 = arith.constant 0 : i32
    return %c0_i32, %c0_i32_0 : i32, i32
  }
  func.func @transform_5(%arg0: i32) -> (i32, i32, i32) {
    %c0_i32 = arith.constant 0 : i32
    %c0_i32_0 = arith.constant 0 : i32
    %c0_i32_1 = arith.constant 0 : i32
    return %arg0, %c0_i32, %c0_i32_0 : i32, i32, i32
  }
}

</mosaic_0001>

<llo_original>
// kernel: critic_forward.1
$region0: #{critic_forward.1}
  #allocation0 [shape = 'u32[]', space=smem, size = 0x4, offset = 0x4, fixed_abs, tag = 'smem constant byte address 0x4 - core index']
  #allocation1 [shape = 'u32[72,128]{1,0:T(1,128)}', space=vmem, size = 0x9000, scoped, tag = 'internal scratch']
  #allocation2 [shape = 'f32[1,1]{1,0:T(1,128)S(1)}', space=vmem, size = 0x200, scoped, tag = 'scoped memory for critic_forward.1']
  %s0 = inlined_call_operand.vmem [shape: f32[256,32], index: 0, kind: input, shape index: {}]
  %s1 = inlined_call_operand.vmem [shape: f32[32,128], index: 1, kind: input, shape index: {}]
  %s2 = inlined_call_operand.vmem [shape: f32[1,128], index: 2, kind: input, shape index: {}]
  %s3 = inlined_call_operand.vmem [shape: f32[1,128], index: 3, kind: input, shape index: {}]
  %s4 = inlined_call_operand.<no memory space> [shape: f32[1,1], index: 4, kind: input, shape index: {}]
  %s5 = inlined_call_operand.hbm [shape: f32[2,1,128], index: 5, kind: output, shape index: {}]
  %s6 = sld [smem:[#allocation0]]
  $region53: #{critic_forward.1} parent=0
    _
  %s8 = ssub.s32 1, %s6
  %s9 = scalar_select 0, %s8, %s6
  %v10 = vstv %s4
  %11 = vst [vmem:[#allocation2] sm:$0x1] %v10
  $region1: #{critic_forward.1} parent=0
    #allocation3 [shape = 'u8[1024]{0}', space=vmem, size = 0x400, scoped, tag = 'output window, operand 0']
    #allocation4 [shape = 's32[2]{0}', space=sflag, size = 0x8, scoped, tag = 'scoped memory for critic_forward.1']
    %12 = vsyncpa [#allocation4], 0
    %s13 = scalar_lea.sflag [#allocation4], 1
    %14 = vsyncpa %s13, 0
    loop: start=0, step=1, limit=4
    $region2: #{critic_forward.1} parent=1 // loop_pre_header
      _
    $region3: #{critic_forward.1} parent=1 // loop_header
      %s16 = sphi 0, %s20
      %p17 = scmp.ge.s32.totalorder %s16, 4
      %s26 = sphi 0, %s28
      %s29 = sphi 0, %s26
      %s30 = sphi 0, %s29
      %s46 = sphi 0, %s30
      %s50 = sphi 0, %s50
      %s52 = sphi 0, %s50
      %s53 = sphi 0, %s52
      %s67 = sphi 0, %s53
      %s71 = sphi 0, %s71
      %s73 = sphi 0, %s71
      %s74 = sphi 0, %s73
      %s88 = sphi 0, %s74
      %s92 = sphi 0, %s92
      %s94 = sphi 0, %s92
      %s95 = sphi 0, %s94
      %s109 = sphi 0, %s95
      %s113 = sphi 0, %s113
      %s115 = sphi 0, %s113
      %s116 = sphi 0, %s115
      %s130 = sphi 0, %s116
      %s136 = sphi 0, %s138
      %s139 = sphi 0, %s136
      %s140 = sphi 0, %s139
      %s156 = sphi 0, %s140
    $region4: #{critic_forward.1} parent=1 // loop_header_branch
      %19 = sbr.rel (%p17) target = $region8
    $region5: #{critic_forward.1} parent=1 // loop_body
      %s21 = ssub.s32 %s16, 1
      %s22 = ssub.s32 %s16, 2
      %s23 = sadd.s32 %s16, 1
      %s24 = ssub.s32 %s16, %s23
      %p25 = scmp.eq.s32.totalorder %s24, 0
      %s27 = sadd.s32 %s26, 1
      %s28 = scalar_select %p25, %s26, %s27
      %p31 = pneg %p25
      %p32 = scmp.eq.s32.totalorder %s16, 1
      %p33 = por %p31, %p32
      %p34 = scmp.ne.s32.totalorder %s26, %s29
      %p35 = scmp.eq.s32.totalorder %s16, 0
      %p36 = por %p34, %p35
      %p37 = scmp.ne.s32.totalorder %s26, %s29
      %p38 = scmp.eq.s32.totalorder %s21, 1
      %p39 = por %p37, %p38
      %p40 = scmp.ne.s32.totalorder %s29, %s30
      %p41 = scmp.eq.s32.totalorder %s21, 0
      %p42 = por %p40, %p41
      %p43 = scmp.ne.s32.totalorder %s29, %s30
      %p44 = scmp.eq.s32.totalorder %s22, 1
      %p45 = por %p43, %p44
      %p47 = scmp.ne.s32.totalorder %s30, %s46
      %p48 = scmp.eq.s32.totalorder %s22, 0
      %p49 = por %p47, %p48
      %s51 = sadd.s32 %s50, 1
      %p54 = scmp.eq.s32.totalorder %s16, 1
      %p55 = scmp.ne.s32.totalorder %s50, %s52
      %p56 = scmp.eq.s32.totalorder %s16, 0
      %p57 = por %p55, %p56
      %p58 = scmp.ne.s32.totalorder %s50, %s52
      %p59 = scmp.eq.s32.totalorder %s21, 1
      %p60 = por %p58, %p59
      %p61 = scmp.ne.s32.totalorder %s52, %s53
      %p62 = scmp.eq.s32.totalorder %s21, 0
      %p63 = por %p61, %p62
      %p64 = scmp.ne.s32.totalorder %s52, %s53
      %p65 = scmp.eq.s32.totalorder %s22, 1
      %p66 = por %p64, %p65
      %p68 = scmp.ne.s32.totalorder %s53, %s67
      %p69 = scmp.eq.s32.totalorder %s22, 0
      %p70 = por %p68, %p69
      %s72 = sadd.s32 %s71, 1
      %p75 = scmp.eq.s32.totalorder %s16, 1
      %p76 = scmp.ne.s32.totalorder %s71, %s73
      %p77 = scmp.eq.s32.totalorder %s16, 0
      %p78 = por %p76, %p77
      %p79 = scmp.ne.s32.totalorder %s71, %s73
      %p80 = scmp.eq.s32.totalorder %s21, 1
      %p81 = por %p79, %p80
      %p82 = scmp.ne.s32.totalorder %s73, %s74
      %p83 = scmp.eq.s32.totalorder %s21, 0
      %p84 = por %p82, %p83
      %p85 = scmp.ne.s32.totalorder %s73, %s74
      %p86 = scmp.eq.s32.totalorder %s22, 1
      %p87 = por %p85, %p86
      %p89 = scmp.ne.s32.totalorder %s74, %s88
      %p90 = scmp.eq.s32.totalorder %s22, 0
      %p91 = por %p89, %p90
      %s93 = sadd.s32 %s92, 1
      %p96 = scmp.eq.s32.totalorder %s16, 1
      %p97 = scmp.ne.s32.totalorder %s92, %s94
      %p98 = scmp.eq.s32.totalorder %s16, 0
      %p99 = por %p97, %p98
      %p100 = scmp.ne.s32.totalorder %s92, %s94
      %p101 = scmp.eq.s32.totalorder %s21, 1
      %p102 = por %p100, %p101
      %p103 = scmp.ne.s32.totalorder %s94, %s95
      %p104 = scmp.eq.s32.totalorder %s21, 0
      %p105 = por %p103, %p104
      %p106 = scmp.ne.s32.totalorder %s94, %s95
      %p107 = scmp.eq.s32.totalorder %s22, 1
      %p108 = por %p106, %p107
      %p110 = scmp.ne.s32.totalorder %s95, %s109
      %p111 = scmp.eq.s32.totalorder %s22, 0
      %p112 = por %p110, %p111
      %s114 = sadd.s32 %s113, 1
      %p117 = scmp.eq.s32.totalorder %s16, 1
      %p118 = scmp.ne.s32.totalorder %s113, %s115
      %p119 = scmp.eq.s32.totalorder %s16, 0
      %p120 = por %p118, %p119
      %p121 = scmp.ne.s32.totalorder %s113, %s115
      %p122 = scmp.eq.s32.totalorder %s21, 1
      %p123 = por %p121, %p122
      %p124 = scmp.ne.s32.totalorder %s115, %s116
      %p125 = scmp.eq.s32.totalorder %s21, 0
      %p126 = por %p124, %p125
      %p127 = scmp.ne.s32.totalorder %s115, %s116
      %p128 = scmp.eq.s32.totalorder %s22, 1
      %p129 = por %p127, %p128
      %p131 = scmp.ne.s32.totalorder %s116, %s130
      %p132 = scmp.eq.s32.totalorder %s22, 0
      %p133 = por %p131, %p132
      %s134 = ssub.s32 %s16, %s23
      %p135 = scmp.eq.s32.totalorder %s134, 0
      %s137 = sadd.s32 %s136, 1
      %s138 = scalar_select %p135, %s136, %s137
      %p141 = pneg %p135
      %p142 = scmp.eq.s32.totalorder %s16, 1
      %p143 = por %p141, %p142
      %p144 = scmp.ne.s32.totalorder %s136, %s139
      %p145 = scmp.eq.s32.totalorder %s16, 0
      %p146 = por %p144, %p145
      %p147 = scmp.ne.s32.totalorder %s136, %s139
      %p148 = scmp.eq.s32.totalorder %s21, 1
      %p149 = por %p147, %p148
      %p150 = scmp.ne.s32.totalorder %s139, %s140
      %p151 = scmp.eq.s32.totalorder %s21, 0
      %p152 = por %p150, %p151
      %p153 = scmp.ne.s32.totalorder %s139, %s140
      %p154 = scmp.eq.s32.totalorder %s22, 1
      %p155 = por %p153, %p154
      %p157 = scmp.ne.s32.totalorder %s140, %s156
      %p158 = scmp.eq.s32.totalorder %s22, 0
      %p159 = por %p157, %p158
      %p160 = scmp.le.s32.totalorder 1, %s16
      %p161 = scmp.lt.s32.totalorder %s16, 3
      %p162 = pnand %p160, %p161
      %p163 = pneg %p162
      // Predicated region
      $region9: #{critic_forward.1} parent=5 // pred_check
        _
      $region10: #{critic_forward.1} parent=5 // pred_check_branch
        %165 = sbr.rel (%p162) target = $region12
      $region11: #{critic_forward.1} parent=5 // pred_region
        %s166 = ssub.s32 %s16, 1
        // Predicated region
        $region13: #{critic_forward.1} parent=11 // pred_check
          %p167 = pneg %p63
        $region14: #{critic_forward.1} parent=11 // pred_check_branch
          %169 = sbr.rel (%p167) target = $region16
        $region15: #{critic_forward.1} parent=11 // pred_region
          _
        $region16: #{critic_forward.1} parent=11 // pred_fallthru
          _
        // Predicated region
        $region17: #{critic_forward.1} parent=11 // pred_check
          %p170 = pneg %p84
        $region18: #{critic_forward.1} parent=11 // pred_check_branch
          %172 = sbr.rel (%p170) target = $region20
        $region19: #{critic_forward.1} parent=11 // pred_region
          _
        $region20: #{critic_forward.1} parent=11 // pred_fallthru
          _
        // Predicated region
        $region21: #{critic_forward.1} parent=11 // pred_check
          %p173 = pneg %p105
        $region22: #{critic_forward.1} parent=11 // pred_check_branch
          %175 = sbr.rel (%p173) target = $region24
        $region23: #{critic_forward.1} parent=11 // pred_region
          _
        $region24: #{critic_forward.1} parent=11 // pred_fallthru
          _
        // Predicated region
        $region25: #{critic_forward.1} parent=11 // pred_check
          %p176 = pneg %p126
        $region26: #{critic_forward.1} parent=11 // pred_check_branch
          %178 = sbr.rel (%p176) target = $region28
        $region27: #{critic_forward.1} parent=11 // pred_region
          _
        $region28: #{critic_forward.1} parent=11 // pred_fallthru
          _
      $region12: #{critic_forward.1} parent=5 // pred_fallthru
        _
      %p179 = scmp.lt.s32.totalorder %s16, 2
      // Predicated region
      $region29: #{critic_forward.1} parent=5 // pred_check
        %p180 = pneg %p179
      $region30: #{critic_forward.1} parent=5 // pred_check_branch
        %182 = sbr.rel (%p180) target = $region32
      $region31: #{critic_forward.1} parent=5 // pred_region
        // Predicated region
        $region33: #{critic_forward.1} parent=31 // pred_check
          %p183 = pneg %p36
        $region34: #{critic_forward.1} parent=31 // pred_check_branch
          %185 = sbr.rel (%p183) target = $region36
        $region35: #{critic_forward.1} parent=31 // pred_region
          %s186 = smul.u32 16, %s16
          %p187 = scmp.lt.s32.totalorder %s186, 31
          %s188 = scalar_select %p187, %s186, 31
          %s189 = smul.addr %s188, 8
          %s190 = scalar_lea.vmem %s0, %s189
          %s191 = smul.u32 16, %s16
        $region36: #{critic_forward.1} parent=31 // pred_fallthru
          _
      $region32: #{critic_forward.1} parent=5 // pred_fallthru
        _
      %p192 = scmp.le.s32.totalorder 1, %s16
      %p193 = scmp.lt.s32.totalorder %s16, 3
      %p194 = pnand %p192, %p193
      %p195 = pneg %p194
      // Predicated region
      $region37: #{critic_forward.1} parent=5 // pred_check
        _
      $region38: #{critic_forward.1} parent=5 // pred_check_branch
        %197 = sbr.rel (%p194) target = $region40
      $region39: #{critic_forward.1} parent=5 // pred_region
        %s198 = ssub.s32 %s16, 1
        %s199 = smul.u32 16, %s21
        %p200 = scmp.lt.s32.totalorder %s199, 31
        %s201 = scalar_select %p200, %s199, 31
        %s202 = smul.addr %s201, 8
        %s203 = scalar_lea.vmem %s0, %s202
        %p204 = pneg %p42
        %p205 = pneg %p39
        %p206 = pneg %p63
        %p207 = pneg %p60
        %p208 = pneg %p84
        %p209 = pneg %p81
        %p210 = pneg %p105
        %p211 = pneg %p102
        %p212 = pneg %p126
        %p213 = pneg %p123
        %p214 = pneg %p152
        %p215 = pneg %p149
        %s216 = sand.u32 %s139, 1
        %s217 = scalar_lea.sflag [#allocation4], %s216
        %s218 = sand.u32 %s139, 1
        %s219 = scalar_lea.vmem [#allocation3], %s218
        %s220 = smul.u32 16, %s21
        %p221 = scmp.lt.s32.totalorder %s220, 31
        %s222 = scalar_select %p221, %s220, 31
        %s223 = smul.addr %s222, 8
        %s224 = scalar_lea.vmem %s0, %s223
        %s225 = smul.u32 16, %s21
        %v226 = vld [vmem:[%s224] sm:$0xff]
        %v227 = vld [vmem:[%s224 + $0x8] sm:$0xff]
        %v228 = vld [vmem:[%s224 + $0x10] sm:$0xff]
        %v229 = vld [vmem:[%s224 + $0x18] sm:$0xff]
        %v230 = vld [vmem:[%s224 + $0x20] sm:$0xff]
        %v231 = vld [vmem:[%s224 + $0x28] sm:$0xff]
        %v232 = vld [vmem:[%s224 + $0x30] sm:$0xff]
        %v233 = vld [vmem:[%s224 + $0x38] sm:$0xff]
        %v234 = vld [vmem:[%s224 + $0x40] sm:$0xff]
        %v235 = vld [vmem:[%s224 + $0x48] sm:$0xff]
        %v236 = vld [vmem:[%s224 + $0x50] sm:$0xff]
        %v237 = vld [vmem:[%s224 + $0x58] sm:$0xff]
        %v238 = vld [vmem:[%s224 + $0x60] sm:$0xff]
        %v239 = vld [vmem:[%s224 + $0x68] sm:$0xff]
        %v240 = vld [vmem:[%s224 + $0x70] sm:$0xff]
        %v241 = vld [vmem:[%s224 + $0x78] sm:$0xff]
        %v242 = vld [vmem:[%s1] sm:$0xff]
        %v243 = vld [vmem:[%s1 + $0x8] sm:$0xff]
        %v244 = vld [vmem:[%s1 + $0x10] sm:$0xff]
        %v245 = vld [vmem:[%s1 + $0x18] sm:$0xff]
        %v246 = vld [vmem:[%s2] sm:$0x1]
        %v248 = vperm.slane %v246, 0
        %vm250 = vcmask 261120
        %v252 = vsel %vm250, %v226, 0
        %v255 = vsel %vm250, %v227, 0
        %v258 = vsel %vm250, %v228, 0
        %v261 = vsel %vm250, %v229, 0
        %v264 = vsel %vm250, %v230, 0
        %v267 = vsel %vm250, %v231, 0
        %v270 = vsel %vm250, %v232, 0
        %v273 = vsel %vm250, %v233, 0
        %v276 = vsel %vm250, %v234, 0
        %v279 = vsel %vm250, %v235, 0
        %v282 = vsel %vm250, %v236, 0
        %v285 = vsel %vm250, %v237, 0
        %v288 = vsel %vm250, %v238, 0
        %v291 = vsel %vm250, %v239, 0
        %v294 = vsel %vm250, %v240, 0
        %v297 = vsel %vm250, %v241, 0
        %299 = vmatpush.msra.mxu0 0.0
        %300 = vmatpush.msra.mxu0 0.0
        %301 = vmatpush.msra.mxu0 0.0
        %302 = vmatpush.msra.mxu0 0.0
        %303 = vmatpush.msra.mxu0 0.0
        %304 = vmatpush.msra.mxu0 0.0
        %305 = vmatpush.msra.mxu0 0.0
        %306 = vmatpush.msra.mxu0 0.0
        %307 = vmatpush.msra.mxu0 0.0
        %308 = vmatpush.msra.mxu0 0.0
        %309 = vmatpush.msra.mxu0 0.0
        %310 = vmatpush.msra.mxu0 0.0
        %311 = vmatpush.msra.mxu0 %v245
        %312 = vmatpush.msra.mxu0 %v244
        %313 = vmatpush.msra.mxu0 %v243
        %314 = vmatpush.msra.mxu0 %v242
        %315 = vmatmul.f32.gmra.mxu0 %v252
        %v316 = vpop.f32.mrf.mxu0
        %v317 = vadd.f32 %v248, %v316
        %318 = vmatmul.f32.gmra.mxu0 %v255
        %v319 = vpop.f32.mrf.mxu0
        %v320 = vadd.f32 %v248, %v319
        %321 = vmatmul.f32.gmra.mxu0 %v258
        %v322 = vpop.f32.mrf.mxu0
        %v323 = vadd.f32 %v248, %v322
        %324 = vmatmul.f32.gmra.mxu0 %v261
        %v325 = vpop.f32.mrf.mxu0
        %v326 = vadd.f32 %v248, %v325
        %327 = vmatmul.f32.gmra.mxu0 %v264
        %v328 = vpop.f32.mrf.mxu0
        %v329 = vadd.f32 %v248, %v328
        %330 = vmatmul.f32.gmra.mxu0 %v267
        %v331 = vpop.f32.mrf.mxu0
        %v332 = vadd.f32 %v248, %v331
        %333 = vmatmul.f32.gmra.mxu0 %v270
        %v334 = vpop.f32.mrf.mxu0
        %v335 = vadd.f32 %v248, %v334
        %336 = vmatmul.f32.gmra.mxu0 %v273
        %v337 = vpop.f32.mrf.mxu0
        %v338 = vadd.f32 %v248, %v337
        %339 = vmatmul.f32.gmra.mxu0 %v276
        %v340 = vpop.f32.mrf.mxu0
        %v341 = vadd.f32 %v248, %v340
        %342 = vmatmul.f32.gmra.mxu0 %v279
        %v343 = vpop.f32.mrf.mxu0
        %v344 = vadd.f32 %v248, %v343
        %345 = vmatmul.f32.gmra.mxu0 %v282
        %v346 = vpop.f32.mrf.mxu0
        %v347 = vadd.f32 %v248, %v346
        %348 = vmatmul.f32.gmra.mxu0 %v285
        %v349 = vpop.f32.mrf.mxu0
        %v350 = vadd.f32 %v248, %v349
        %351 = vmatmul.f32.gmra.mxu0 %v288
        %v352 = vpop.f32.mrf.mxu0
        %v353 = vadd.f32 %v248, %v352
        %354 = vmatmul.f32.gmra.mxu0 %v291
        %v355 = vpop.f32.mrf.mxu0
        %v356 = vadd.f32 %v248, %v355
        %357 = vmatmul.f32.gmra.mxu0 %v294
        %v358 = vpop.f32.mrf.mxu0
        %v359 = vadd.f32 %v248, %v358
        %360 = vmatmul.f32.gmra.mxu0 %v297
        %v361 = vpop.f32.mrf.mxu0
        %v362 = vadd.f32 %v248, %v361
        %363 = vdwg.mxu0
        %v364 = vtanh.pop %v317
        %v365 = vtanh.pop %v320
        %v366 = vtanh.pop %v323
        %v367 = vtanh.pop %v326
        %v368 = vtanh.pop %v329
        %v369 = vtanh.pop %v332
        %v370 = vtanh.pop %v335
        %v371 = vtanh.pop %v338
        %v372 = vtanh.pop %v341
        %v373 = vtanh.pop %v344
        %v374 = vtanh.pop %v347
        %v375 = vtanh.pop %v350
        %v376 = vtanh.pop %v353
        %v377 = vtanh.pop %v356
        %v378 = vtanh.pop %v359
        %v379 = vtanh.pop %v362
        %v380 = vld [vmem:[%s3] sm:$0x1]
        %v381 = vld [vmem:[#allocation2] sm:$0x1]
        %383 = vset.pattern.permute.xlu0 0
        %384 = vperm.xlu0 %383, %v381
        %v385 = vpop.permute.xlu0 %384
        %v387 = vperm.slane %v385, 0
        %388 = vmatpush.xpose.msra.mxu0 %v379
        %389 = vmatpush.xpose.msra.mxu0 %v378
        %390 = vmatpush.xpose.msra.mxu0 %v377
        %391 = vmatpush.xpose.msra.mxu0 %v376
        %392 = vmatpush.xpose.msra.mxu0 %v375
        %393 = vmatpush.xpose.msra.mxu0 %v374
        %394 = vmatpush.xpose.msra.mxu0 %v373
        %395 = vmatpush.xpose.msra.mxu0 %v372
        %396 = vmatpush.xpose.msra.mxu0 %v371
        %397 = vmatpush.xpose.msra.mxu0 %v370
        %398 = vmatpush.xpose.msra.mxu0 %v369
        %399 = vmatpush.xpose.msra.mxu0 %v368
        %400 = vmatpush.xpose.msra.mxu0 %v367
        %401 = vmatpush.xpose.msra.mxu0 %v366
        %402 = vmatpush.xpose.msra.mxu0 %v365
        %403 = vmatpush.xpose.msra.mxu0 %v364
        %404 = vmatmul.f32.gmra.mxu0 %v380
        %v405 = vpop.f32.mrf.mxu0
        %v406 = vadd.f32 %v387, %v405
        %407 = vdwg.mxu0
        %408 = vst [vmem:[%s219] sm:$0x1] %v406
        %s409 = sand.u32 %s139, 1
        %s410 = scalar_lea.sflag [#allocation4], %s409
        %s411 = sand.u32 %s139, 1
        %s412 = scalar_lea.vmem [#allocation3], %s411
        // Predicated region
        $region41: #{critic_forward.1} parent=39 // pred_check
          %p413 = pneg %p149
        $region42: #{critic_forward.1} parent=39 // pred_check_branch
          %415 = sbr.rel (%p413) target = $region44
        $region43: #{critic_forward.1} parent=39 // pred_region
          %417 = vsyncadd %s410, 0
          %s418 = scalar_lea.hbm %s5, %s21
          %s420 = sshll.u32 %s412, 4
          %s421 = int_to_ptr.vmem [resolvable:$true] %s420
          %s422 = sshll.u32 %s418, 4
          %s423 = int_to_ptr.hbm [resolvable:$true] %s422
          %425 = dma.vmem_to_hbm [thread:$0]  %s421, 16, %s423, %s410
        $region44: #{critic_forward.1} parent=39 // pred_fallthru
          _
      $region40: #{critic_forward.1} parent=5 // pred_fallthru
        _
      %p426 = scmp.le.s32.totalorder 2, %s16
      // Predicated region
      $region45: #{critic_forward.1} parent=5 // pred_check
        %p427 = pneg %p426
      $region46: #{critic_forward.1} parent=5 // pred_check_branch
        %429 = sbr.rel (%p427) target = $region48
      $region47: #{critic_forward.1} parent=5 // pred_region
        %s430 = ssub.s32 %s16, 2
        // Predicated region
        $region49: #{critic_forward.1} parent=47 // pred_check
          %p431 = pneg %p155
        $region50: #{critic_forward.1} parent=47 // pred_check_branch
          %433 = sbr.rel (%p431) target = $region52
        $region51: #{critic_forward.1} parent=47 // pred_region
          %s434 = sand.u32 %s140, 1
          %s435 = scalar_lea.sflag [#allocation4], %s434
          %s436 = sand.u32 %s140, 1
          %s437 = scalar_lea.vmem [#allocation3], %s436
          %439 = dma.done %s435, 16
        $region52: #{critic_forward.1} parent=47 // pred_fallthru
          _
      $region48: #{critic_forward.1} parent=5 // pred_fallthru
        _
    $region6: #{critic_forward.1} parent=1 // loop_footer
      %s20 = sadd.s32 1, %s16
    $region7: #{critic_forward.1} parent=1 // loop_footer_branch
      %15 = sbr.rel target = $region3
    $region8: #{critic_forward.1} parent=1 // loop_exit
      _
    %440 = vsyncpa [#allocation4], 1
    %s441 = scalar_lea.sflag [#allocation4], 1
    %442 = vsyncpa %s441, 1

</llo_original>
